<compile_context>
chip_gen: v5e
topology: v5e:2x2
jax: 0.10.0
libtpu: 0.0.40
codegen_flags: <defaults>
</compile_context>

<pallas_src>
import functools

import jax
import jax.numpy as jnp
from jax.experimental import pallas as pl
from jax.experimental.pallas import tpu as pltpu


def _tas_decoder_kernel(w_ref, patch_ref, filt_ref, out_ref, *,
                        stride, stride_pad, n_over, tile_t, t_valid, use_roll):
    """One (batch, time-tile) grid step.

    w_ref:     (1, N, tile_t)           encoded frames, native channels-first
    patch_ref: (1, 1, stride, n_halo)   seam contribution of the previous
                                        tile's last n_over-1 frames (f32)
    filt_ref:  (n_over*stride_pad, N)   sublane-aligned transposed filters
    out_ref:   (1, stride, tile_t)      lane-dense output segments of this tile
    """
    t = pl.program_id(1)

    w_blk = w_ref[0]                                      # (N, tile_t)
    if w_blk.dtype != filt_ref.dtype:
        # Only hit when the producer emits a different dtype than the MXU
        # feed; pass w already in compute_dtype (e.g. bf16) to skip it AND
        # halve the HBM read.
        w_blk = w_blk.astype(filt_ref.dtype)

    # MXU: (n_over*stride_pad, N) @ (N, tile_t) -> frames; time on lanes,
    # f32 accumulation regardless of the input dtype.
    frames = jnp.dot(filt_ref[...], w_blk, preferred_element_type=jnp.float32)

    # Zero contributions from frames past the true end of the sequence (the
    # ragged / clamped last time tile).  Value-level select, ~2 VPU ops over
    # frames per step, so it is left ungated.
    lane = jax.lax.broadcasted_iota(jnp.int32, (1, tile_t), 1)
    frames = jnp.where(lane + t * tile_t < t_valid, frames, 0.0)

    # Overlap-add in registers: tap group j of frame tau lands in segment
    # tau + j.  Slab j is rolled right by j lanes; the first j lanes (which
    # belong to frames of the previous tile) are masked off and replaced by
    # the precomputed seam patch.
    out_acc = frames[0:stride, :]                         # j == 0 term
    if n_over > 1:
        n_halo = n_over - 1
        for j in range(1, n_over):                        # tiny static loop
            slab = frames[j * stride_pad:j * stride_pad + stride, :]
            if use_roll:
                contrib = jnp.where(lane >= j,
                                    pltpu.roll(slab, shift=j, axis=1), 0.0)
            else:   # small single-tile path (tile_t not a multiple of 128)
                contrib = jnp.concatenate(
                    [jnp.zeros((stride, j), jnp.float32),
                     slab[:, :tile_t - j]], axis=1)
            out_acc = out_acc + contrib
        patch = patch_ref[0, 0]                           # (stride, n_halo)
        for s in range(n_halo):
            out_acc = out_acc + jnp.where(lane == s, patch[:, s:s + 1], 0.0)
    out_ref[0] = out_acc                                  # single lane-dense store


def tas_decoder(w, weight, *, L, stride=None, bias=None,
                compute_dtype=jnp.float32, tile_t=2048):
    """Pallas TasDecoder forward.

    Args:
      w:      (B, N, T_enc) hidden representation (PyTorch layout, untouched;
              pass bf16 to halve the HBM-bound read).
      weight: (N, 1, L) ConvTranspose1d weight (in, out=1, kernel).
      bias:   optional scalar ConvTranspose1d bias (out_channels == 1).
      compute_dtype: dtype fed to the MXU (f32 or bf16); accumulation is f32.
      tile_t: frames per time tile (rounded down to a multiple of 128).
              2048 fits v5e's 16 MiB default scoped VMEM at N=512 f32; raise
              on v6e/v7x (the explicit vmem_limit below scales with it).
    Returns:
      (B, T_out) with T_out = (T_enc - 1) * stride + L.
    """
    if stride is None:
        stride = L // 2
    B, N, T_enc = w.shape
    T_out = (T_enc - 1) * stride + L
    compute_dtype = jnp.dtype(compute_dtype)

    n_over = -(-L // stride)                 # ceil(L / stride) frame overlap
    stride_pad = -(-stride // 8) * 8         # sublane-aligned slab height
    L_rows = n_over * stride_pad
    n_seg = T_enc + n_over - 1               # stride-wide output segments
    n_halo = max(n_over - 1, 1)

    # Transposed filter, one sublane-aligned slab per tap group:
    #   filt[j*stride_pad + r, n] = weight[n, 0, j*stride + r]   (zero padded)
    wt = jnp.transpose(weight[:, 0, :]).astype(compute_dtype)      # (L, N)
    filt = jnp.zeros((L_rows, N), compute_dtype)
    for j in range(n_over):
        lo, hi = j * stride, min((j + 1) * stride, L)
        filt = filt.at[j * stride_pad:j * stride_pad + (hi - lo), :].set(wt[lo:hi])

    # Time tile = lane dimension of every block.
    tile_t = max(128, (tile_t // 128) * 128)
    if T_enc >= 128:
        tt = min(tile_t, (T_enc // 128) * 128)   # multiple of 128, <= T_enc
        w_in, t_in, use_roll = w, T_enc, True    # no pad, no transpose
    else:
        tt = n_seg                               # single tile; pad w slightly
        w_in = jnp.pad(w, ((0, 0), (0, 0), (0, n_seg - T_enc)))
        t_in, use_roll = n_seg, False
    n_t = pl.cdiv(n_seg, tt)
    s_pad = n_t * tt                             # segments materialized
    t_last_in = max((t_in - 1) // tt, 0)         # clamp fully-OOB last block

    # Seam patch: contribution of the previous tile's last n_halo frames to
    # the first n_halo segments of each tile (tiny; computed once by XLA so
    # the kernel needs no carry and the time axis stays parallel).
    if n_over > 1:
        idx = (jnp.arange(n_t) * tt)[:, None] + (
            jnp.arange(n_halo)[None, :] - (n_over - 1))              # (n_t, n_halo)
        valid = (idx >= 0) & (idx < T_enc)
        halo_w = jnp.take(w, jnp.clip(idx, 0, T_enc - 1).reshape(-1), axis=2)
        halo_w = halo_w.reshape(B, N, n_t, n_halo)
        halo_w = jnp.where(valid[None, None], halo_w, 0).astype(jnp.float32)
        hframes = jnp.einsum('bnth,nl->bthl', halo_w,
                             weight[:, 0, :].astype(jnp.float32))    # (B,n_t,h,L)
        s_i = jnp.arange(n_halo)
        h_i = jnp.arange(n_halo)
        r_i = jnp.arange(stride)
        j_sh = s_i[:, None] + (n_over - 1) - h_i[None, :]            # tap group
        tap = j_sh[:, :, None] * stride + r_i[None, None, :]         # (s, h, r)
        ok = (j_sh[:, :, None] < n_over) & (tap < L)
        hf = hframes[:, :, jnp.broadcast_to(h_i[None, :, None], tap.shape),
                     jnp.clip(tap, 0, L - 1)]                        # (B,n_t,s,h,r)
        patch = jnp.transpose(
            jnp.sum(jnp.where(ok[None, None], hf, 0.0), axis=3),
            (0, 1, 3, 2)).astype(jnp.float32)                        # (B,n_t,stride,h)
    else:
        patch = jnp.zeros((B, n_t, stride, n_halo), jnp.float32)

    kernel = functools.partial(
        _tas_decoder_kernel, stride=stride, stride_pad=stride_pad,
        n_over=n_over, tile_t=tt, t_valid=T_enc, use_roll=use_roll)

    flops = 2 * B * n_t * tt * N * L_rows
    bytes_accessed = int(w_in.size * w_in.dtype.itemsize
                         + filt.size * filt.dtype.itemsize
                         + patch.size * 4
                         + B * stride * s_pad * 4)

    # Explicit scoped-VMEM budget: double-buffered blocks + frame/out temps.
    vmem_bytes = (2 * N * tt * w_in.dtype.itemsize          # w (double-buffered)
                  + 2 * stride * tt * 4                     # out (double-buffered)
                  + 2 * stride * n_halo * 4                 # patch
                  + L_rows * N * compute_dtype.itemsize     # filt
                  + (L_rows + 3 * stride_pad) * tt * 4      # frames + out_acc
                  + (2 << 20))                              # compiler slack
    vmem_limit = int(min(max(2 * vmem_bytes, 32 << 20), 64 << 20))

    out_seg = pl.pallas_call(
        kernel,
        out_shape=jax.ShapeDtypeStruct((B, stride, s_pad), jnp.float32),
        grid_spec=pltpu.PrefetchScalarGridSpec(
            num_scalar_prefetch=0,
            grid=(B, n_t),
            in_specs=[
                pl.BlockSpec((1, N, tt),
                             lambda b, t: (b, 0, jnp.minimum(t, t_last_in))),
                pl.BlockSpec((1, 1, stride, n_halo), lambda b, t: (b, t, 0, 0)),
                pl.BlockSpec((L_rows, N), lambda b, t: (0, 0)),
            ],
            out_specs=pl.BlockSpec((1, stride, tt), lambda b, t: (b, 0, t)),
        ),
        compiler_params=pltpu.CompilerParams(
            dimension_semantics=("parallel", "parallel"),
            vmem_limit_bytes=vmem_limit),
        cost_estimate=pl.CostEstimate(flops=flops, transcendentals=0,
                                      bytes_accessed=bytes_accessed),
    )(w_in, patch, filt)

    # (B, stride, s_pad): sample (segment s, offset r) lives at time s*stride+r.
    out = jnp.transpose(out_seg, (0, 2, 1)).reshape(B, s_pad * stride)[:, :T_out]
    if bias is not None:
        # ConvTranspose1d bias with one output channel = one scalar per sample.
        out = out + jnp.asarray(bias, jnp.float32)
    return out


def tas_decoder_ref(w, weight, *, L, stride=None, bias=None):
    """Pure-JAX reference (direct ConvTranspose1d semantics)."""
    if stride is None:
        stride = L // 2
    B, N, T_enc = w.shape
    T_out = (T_enc - 1) * stride + L
    frames = jnp.einsum('bnt,nl->btl', w.astype(jnp.float32),
                        weight[:, 0, :].astype(jnp.float32))    # (B, T_enc, L)
    idx = jnp.arange(T_enc)[:, None] * stride + jnp.arange(L)[None, :]
    out = jnp.zeros((B, T_out), jnp.float32).at[:, idx].add(frames)
    if bias is not None:
        out = out + jnp.asarray(bias, jnp.float32)
    return out


if __name__ == "__main__":
    master_key = jax.random.PRNGKey(0)

    def run_case(key, B, N, T_enc, L, *, stride=None, tile_t=2048,
                 compute_dtype=jnp.float32, w_dtype=jnp.float32,
                 atol=1e-4, rtol=1e-4, bias=None):
        k_w, k_f = jax.random.split(key)
        w = jax.random.normal(k_w, (B, N, T_enc), jnp.float32)
        weight = jax.random.normal(k_f, (N, 1, L), jnp.float32) / (N ** 0.5)
        out = tas_decoder(w.astype(w_dtype), weight, L=L, stride=stride,
                          bias=bias, compute_dtype=compute_dtype, tile_t=tile_t)
        out = jax.block_until_ready(out)
        ref = tas_decoder_ref(w, weight, L=L, stride=stride, bias=bias)
        s = L // 2 if stride is None else stride
        assert out.shape == (B, (T_enc - 1) * s + L), out.shape
        err = float(jnp.max(jnp.abs(out - ref)))
        assert jnp.allclose(out, ref, atol=atol, rtol=rtol), err

    keys = jax.random.split(master_key, 7)
    # 1) small single-tile path (same shapes as the module's small config)
    run_case(keys[0], B=2, N=32, T_enc=8, L=16)
    # 2) bf16 MXU feed with in-kernel cast + f32 accumulation
    run_case(keys[1], B=2, N=32, T_enc=8, L=16,
             compute_dtype=jnp.bfloat16, atol=5e-2, rtol=5e-2)
    # 3) multi-tile roll path: halo seam across tiles + ragged last block
    run_case(keys[2], B=2, N=32, T_enc=200, L=16, tile_t=128)
    # 4) module-default kernel size: L=20 -> stride=10 (sublane-padded slabs)
    run_case(keys[3], B=1, N=64, T_enc=150, L=20, tile_t=128)
    # 5) L not a multiple of stride (n_over=3), single-tile + scalar bias
    run_case(keys[4], B=1, N=16, T_enc=40, L=20, stride=8, bias=0.5)
    # 6) n_over=3 on the multi-tile roll path (two halo frames per tile)
    run_case(keys[5], B=1, N=16, T_enc=300, L=20, stride=8, tile_t=128, bias=0.5)
    # 7) bf16 w fed straight from HBM (the review's main lever), multi-tile
    run_case(keys[6], B=2, N=64, T_enc=256, L=16, tile_t=128,
             w_dtype=jnp.bfloat16, compute_dtype=jnp.bfloat16,
             atol=2e-1, rtol=5e-2)

    print("KERNEL_OK")
</pallas_src>

<mosaic_0001>
module attributes {stable_mosaic.version = 11 : i64} {
  func.func @_tas_decoder_kernel(%arg0: i32, %arg1: i32, %arg2: memref<1x32x9xf32, #tpu.memory_space<vmem>>, %arg3: memref<1x1x8x1xf32, #tpu.memory_space<vmem>>, %arg4: memref<16x32xf32, #tpu.memory_space<vmem>>, %arg5: memref<1x8x9xf32, #tpu.memory_space<vmem>>) attributes {dimension_semantics = [#tpu.dimension_semantics<parallel>, #tpu.dimension_semantics<parallel>], iteration_bounds = array<i64: 2, 1>, scalar_prefetch = 0 : i64, scratch_operands = 0 : i64, tpu.core_type = #tpu.core_type<tc>, window_params = [{transform_indices = @transform_0, window_bounds = array<i64: 1, 32, 9>}, {transform_indices = @transform_1, window_bounds = array<i64: 1, 1, 8, 1>}, {pipeline_mode = #tpu.pipeline_mode<synchronous>, transform_indices = @transform_2, window_bounds = array<i64: 16, 32>}, {transform_indices = @transform_3, window_bounds = array<i64: 1, 8, 9>}]} {
    %c0 = arith.constant 0 : index
    %c0_0 = arith.constant 0 : index
    %c0_1 = arith.constant 0 : index
    %0 = vector.load %arg2[%c0, %c0_0, %c0_1] : memref<1x32x9xf32, #tpu.memory_space<vmem>>, vector<1x32x9xf32>
    %1 = vector.shape_cast %0 : vector<1x32x9xf32> to vector<32x9xf32>
    %c0_2 = arith.constant 0 : index
    %c0_3 = arith.constant 0 : index
    %2 = vector.load %arg4[%c0_2, %c0_3] : memref<16x32xf32, #tpu.memory_space<vmem>>, vector<16x32xf32>
    %cst = arith.constant dense<0.000000e+00> : vector<16x9xf32>
    %3 = tpu.matmul %2, %1, %cst {dimension_numbers = #tpu.dot_dimension_numbers<[1], [0], [0], [1], [0, 0, 1, 1], [], []>} : vector<16x32xf32>, vector<32x9xf32>, vector<16x9xf32> -> vector<16x9xf32>
    %4 = tpu.iota {dimensions = array<i32: 1>} : vector<1x9xi32>
    %c9_i32 = arith.constant 9 : i32
    %5 = arith.muli %arg1, %c9_i32 : i32
    %6 = vector.broadcast %5 : i32 to vector<1x9xi32>
    %7 = arith.addi %4, %6 : vector<1x9xi32>
    %c8_i32 = arith.constant 8 : i32
    %8 = vector.broadcast %c8_i32 : i32 to vector<1x9xi32>
    %9 = arith.cmpi slt, %7, %8 : vector<1x9xi32>
    %cst_4 = arith.constant 0.000000e+00 : f32
    %10 = vector.shape_cast %9 : vector<1x9xi1> to vector<1x9xi1>
    %11 = vector.broadcast %10 : vector<1x9xi1> to vector<16x9xi1>
    %12 = vector.broadcast %cst_4 : f32 to vector<16x9xf32>
    %13 = arith.select %11, %3, %12 : vector<16x9xi1>, vector<16x9xf32>
    %14 = vector.extract_strided_slice %13 {offsets = [0, 0], sizes = [8, 9], strides = [1, 1]} : vector<16x9xf32> to vector<8x9xf32>
    %15 = vector.extract_strided_slice %13 {offsets = [8, 0], sizes = [8, 9], strides = [1, 1]} : vector<16x9xf32> to vector<8x9xf32>
    %cst_5 = arith.constant 0.000000e+00 : f32
    %16 = vector.broadcast %cst_5 : f32 to vector<8x1xf32>
    %17 = vector.extract_strided_slice %15 {offsets = [0, 0], sizes = [8, 8], strides = [1, 1]} : vector<8x9xf32> to vector<8x8xf32>
    %18 = tpu.concatenate %16, %17 in 1 : vector<8x1xf32>, vector<8x8xf32> -> vector<8x9xf32>
    %19 = arith.addf %14, %18 : vector<8x9xf32>
    %c0_6 = arith.constant 0 : index
    %c0_7 = arith.constant 0 : index
    %c0_8 = arith.constant 0 : index
    %c0_9 = arith.constant 0 : index
    %20 = vector.load %arg3[%c0_6, %c0_7, %c0_8, %c0_9] : memref<1x1x8x1xf32, #tpu.memory_space<vmem>>, vector<1x1x8x1xf32>
    %21 = vector.shape_cast %20 : vector<1x1x8x1xf32> to vector<8x1xf32>
    %c0_i32 = arith.constant 0 : i32
    %22 = vector.broadcast %c0_i32 : i32 to vector<1x9xi32>
    %23 = arith.cmpi eq, %4, %22 : vector<1x9xi32>
    %cst_10 = arith.constant 0.000000e+00 : f32
    %24 = vector.shape_cast %23 : vector<1x9xi1> to vector<1x9xi1>
    %25 = vector.broadcast %24 : vector<1x9xi1> to vector<8x9xi1>
    %26 = vector.shape_cast %21 : vector<8x1xf32> to vector<8x1xf32>
    %27 = vector.broadcast %26 : vector<8x1xf32> to vector<8x9xf32>
    %28 = vector.broadcast %cst_10 : f32 to vector<8x9xf32>
    %29 = arith.select %25, %27, %28 : vector<8x9xi1>, vector<8x9xf32>
    %30 = arith.addf %19, %29 : vector<8x9xf32>
    %c0_11 = arith.constant 0 : index
    %c0_12 = arith.constant 0 : index
    %c0_13 = arith.constant 0 : index
    %31 = vector.load %arg5[%c0_11, %c0_12, %c0_13] : memref<1x8x9xf32, #tpu.memory_space<vmem>>, vector<1x8x9xf32>
    %32 = vector.shape_cast %31 : vector<1x8x9xf32> to vector<8x9xf32>
    %33 = vector.shape_cast %30 : vector<8x9xf32> to vector<1x8x9xf32>
    tpu.vector_store %arg5[%c0_11, %c0_12, %c0_13], %33 {strides = array<i32>} : memref<1x8x9xf32, #tpu.memory_space<vmem>>, vector<1x8x9xf32>,
    return
  }
  func.func @transform_0(%arg0: i32, %arg1: i32) -> (i32, i32, i32) {
    %c0_i32 = arith.constant 0 : i32
    %0 = arith.minsi %arg1, %c0_i32 : i32
    %c0_i32_0 = arith.constant 0 : i32
    %c0_i32_1 = arith.constant 0 : i32
    return %arg0, %c0_i32_0, %0 : i32, i32, i32
  }
  func.func @transform_1(%arg0: i32, %arg1: i32) -> (i32, i32, i32, i32) {
    %c0_i32 = arith.constant 0 : i32
    %c0_i32_0 = arith.constant 0 : i32
    %c0_i32_1 = arith.constant 0 : i32
    return %arg0, %arg1, %c0_i32, %c0_i32_0 : i32, i32, i32, i32
  }
  func.func @transform_2(%arg0: i32, %arg1: i32) -> (i32, i32) {
    %c0_i32 = arith.constant 0 : i32
    %c0_i32_0 = arith.constant 0 : i32
    %c0_i32_1 = arith.constant 0 : i32
    return %c0_i32, %c0_i32_0 : i32, i32
  }
  func.func @transform_3(%arg0: i32, %arg1: i32) -> (i32, i32, i32) {
    %c0_i32 = arith.constant 0 : i32
    %c0_i32_0 = arith.constant 0 : i32
    return %arg0, %c0_i32, %arg1 : i32, i32, i32
  }
}

</mosaic_0001>

<llo_original>
// kernel: tpu_custom_call.1
$region0: #{tpu_custom_call.1}
  #allocation0 [shape = 'u32[]', space=smem, size = 0x4, offset = 0x4, fixed_abs, tag = 'smem constant byte address 0x4 - core index']
  #allocation1 [shape = 'u32[72,128]{1,0:T(1,128)}', space=vmem, size = 0x9000, scoped, tag = 'internal scratch']
  %s0 = inlined_call_operand.vmem [shape: f32[2,32,9], index: 0, kind: input, shape index: {}]
  %s1 = inlined_call_operand.vmem [shape: f32[2,1,8,1], index: 1, kind: input, shape index: {}]
  %s2 = inlined_call_operand.vmem [shape: f32[16,32], index: 2, kind: input, shape index: {}]
  %s3 = inlined_call_operand.hbm [shape: f32[2,8,9], index: 3, kind: output, shape index: {}]
  %s4 = sld [smem:[#allocation0]]
  $region45: #{tpu_custom_call.1} parent=0
    _
  %s6 = ssub.s32 1, %s4
  %s7 = scalar_select 0, %s6, %s4
  $region1: #{tpu_custom_call.1} parent=0
    #allocation2 [shape = 'u8[8192]{0}', space=vmem, size = 0x2000, scoped, tag = 'output window, operand 0']
    #allocation3 [shape = 's32[2]{0}', space=sflag, size = 0x8, scoped, tag = 'scoped memory for tpu_custom_call.1']
    %8 = vsyncpa [#allocation3], 0
    %s9 = scalar_lea.sflag [#allocation3], 1
    %10 = vsyncpa %s9, 0
    loop: start=0, step=1, limit=4
    $region2: #{tpu_custom_call.1} parent=1 // loop_pre_header
      _
    $region3: #{tpu_custom_call.1} parent=1 // loop_header
      %s12 = sphi 0, %s16
      %p13 = scmp.ge.s32.totalorder %s12, 4
      %s19 = sphi 0, %s31
      %s20 = sphi 0, %s27
      %s21 = sphi 0, %s19
      %s22 = sphi 0, %s20
      %s23 = sphi 0, %s21
      %s24 = sphi 0, %s22
      %s40 = sphi 0, %s42
      %s43 = sphi 0, %s40
      %s44 = sphi 0, %s43
      %s60 = sphi 0, %s44
      %s68 = sphi 0, %s70
      %s71 = sphi 0, %s68
      %s72 = sphi 0, %s71
      %s88 = sphi 0, %s72
      %s92 = sphi 0, %s92
      %s94 = sphi 0, %s92
      %s95 = sphi 0, %s94
      %s109 = sphi 0, %s95
      %s117 = sphi 0, %s119
      %s120 = sphi 0, %s117
      %s121 = sphi 0, %s120
      %s137 = sphi 0, %s121
    $region4: #{tpu_custom_call.1} parent=1 // loop_header_branch
      %15 = sbr.rel (%p13) target = $region8
    $region5: #{tpu_custom_call.1} parent=1 // loop_body
      %s17 = ssub.s32 %s12, 1
      %s18 = ssub.s32 %s12, 2
      %s25 = sadd.s32 1, %s20
      %p26 = scmp.ge.s32.totalorder %s25, 1
      %s27 = scalar_select %p26, 0, %s25
      %s28 = sadd.s32 1, %s19
      %s29 = scalar_select %p26, %s28, %s19
      %p30 = scmp.ge.s32.totalorder %s29, 2
      %s31 = scalar_select %p30, 0, %s29
      %p32 = scmp.lt.s32.totalorder %s20, 0
      %s33 = scalar_select %p32, %s20, 0
      %p34 = scmp.lt.s32.totalorder %s27, 0
      %s35 = scalar_select %p34, %s27, 0
      %s36 = ssub.s32 %s19, %s31
      %s37 = ssub.s32 %s33, %s35
      %s38 = sor.u32 %s36, %s37
      %p39 = scmp.eq.s32.totalorder %s38, 0
      %s41 = sadd.s32 %s40, 1
      %s42 = scalar_select %p39, %s40, %s41
      %p45 = pneg %p39
      %p46 = scmp.eq.s32.totalorder %s12, 1
      %p47 = por %p45, %p46
      %p48 = scmp.ne.s32.totalorder %s40, %s43
      %p49 = scmp.eq.s32.totalorder %s12, 0
      %p50 = por %p48, %p49
      %p51 = scmp.ne.s32.totalorder %s40, %s43
      %p52 = scmp.eq.s32.totalorder %s17, 1
      %p53 = por %p51, %p52
      %p54 = scmp.ne.s32.totalorder %s43, %s44
      %p55 = scmp.eq.s32.totalorder %s17, 0
      %p56 = por %p54, %p55
      %p57 = scmp.ne.s32.totalorder %s43, %s44
      %p58 = scmp.eq.s32.totalorder %s18, 1
      %p59 = por %p57, %p58
      %p61 = scmp.ne.s32.totalorder %s44, %s60
      %p62 = scmp.eq.s32.totalorder %s18, 0
      %p63 = por %p61, %p62
      %s64 = ssub.s32 %s19, %s31
      %s65 = ssub.s32 %s20, %s27
      %s66 = sor.u32 %s64, %s65
      %p67 = scmp.eq.s32.totalorder %s66, 0
      %s69 = sadd.s32 %s68, 1
      %s70 = scalar_select %p67, %s68, %s69
      %p73 = pneg %p67
      %p74 = scmp.eq.s32.totalorder %s12, 1
      %p75 = por %p73, %p74
      %p76 = scmp.ne.s32.totalorder %s68, %s71
      %p77 = scmp.eq.s32.totalorder %s12, 0
      %p78 = por %p76, %p77
      %p79 = scmp.ne.s32.totalorder %s68, %s71
      %p80 = scmp.eq.s32.totalorder %s17, 1
      %p81 = por %p79, %p80
      %p82 = scmp.ne.s32.totalorder %s71, %s72
      %p83 = scmp.eq.s32.totalorder %s17, 0
      %p84 = por %p82, %p83
      %p85 = scmp.ne.s32.totalorder %s71, %s72
      %p86 = scmp.eq.s32.totalorder %s18, 1
      %p87 = por %p85, %p86
      %p89 = scmp.ne.s32.totalorder %s72, %s88
      %p90 = scmp.eq.s32.totalorder %s18, 0
      %p91 = por %p89, %p90
      %s93 = sadd.s32 %s92, 1
      %p96 = scmp.eq.s32.totalorder %s12, 1
      %p97 = scmp.ne.s32.totalorder %s92, %s94
      %p98 = scmp.eq.s32.totalorder %s12, 0
      %p99 = por %p97, %p98
      %p100 = scmp.ne.s32.totalorder %s92, %s94
      %p101 = scmp.eq.s32.totalorder %s17, 1
      %p102 = por %p100, %p101
      %p103 = scmp.ne.s32.totalorder %s94, %s95
      %p104 = scmp.eq.s32.totalorder %s17, 0
      %p105 = por %p103, %p104
      %p106 = scmp.ne.s32.totalorder %s94, %s95
      %p107 = scmp.eq.s32.totalorder %s18, 1
      %p108 = por %p106, %p107
      %p110 = scmp.ne.s32.totalorder %s95, %s109
      %p111 = scmp.eq.s32.totalorder %s18, 0
      %p112 = por %p110, %p111
      %s113 = ssub.s32 %s19, %s31
      %s114 = ssub.s32 %s20, %s27
      %s115 = sor.u32 %s113, %s114
      %p116 = scmp.eq.s32.totalorder %s115, 0
      %s118 = sadd.s32 %s117, 1
      %s119 = scalar_select %p116, %s117, %s118
      %p122 = pneg %p116
      %p123 = scmp.eq.s32.totalorder %s12, 1
      %p124 = por %p122, %p123
      %p125 = scmp.ne.s32.totalorder %s117, %s120
      %p126 = scmp.eq.s32.totalorder %s12, 0
      %p127 = por %p125, %p126
      %p128 = scmp.ne.s32.totalorder %s117, %s120
      %p129 = scmp.eq.s32.totalorder %s17, 1
      %p130 = por %p128, %p129
      %p131 = scmp.ne.s32.totalorder %s120, %s121
      %p132 = scmp.eq.s32.totalorder %s17, 0
      %p133 = por %p131, %p132
      %p134 = scmp.ne.s32.totalorder %s120, %s121
      %p135 = scmp.eq.s32.totalorder %s18, 1
      %p136 = por %p134, %p135
      %p138 = scmp.ne.s32.totalorder %s121, %s137
      %p139 = scmp.eq.s32.totalorder %s18, 0
      %p140 = por %p138, %p139
      %p141 = scmp.le.s32.totalorder 1, %s12
      %p142 = scmp.lt.s32.totalorder %s12, 3
      %p143 = pnand %p141, %p142
      %p144 = pneg %p143
      // Predicated region
      $region9: #{tpu_custom_call.1} parent=5 // pred_check
        _
      $region10: #{tpu_custom_call.1} parent=5 // pred_check_branch
        %146 = sbr.rel (%p143) target = $region12
      $region11: #{tpu_custom_call.1} parent=5 // pred_region
        %s147 = ssub.s32 %s12, 1
        // Predicated region
        $region13: #{tpu_custom_call.1} parent=11 // pred_check
          %p148 = pneg %p105
        $region14: #{tpu_custom_call.1} parent=11 // pred_check_branch
          %150 = sbr.rel (%p148) target = $region16
        $region15: #{tpu_custom_call.1} parent=11 // pred_region
          _
        $region16: #{tpu_custom_call.1} parent=11 // pred_fallthru
          _
      $region12: #{tpu_custom_call.1} parent=5 // pred_fallthru
        _
      %p151 = scmp.lt.s32.totalorder %s12, 2
      // Predicated region
      $region17: #{tpu_custom_call.1} parent=5 // pred_check
        %p152 = pneg %p151
      $region18: #{tpu_custom_call.1} parent=5 // pred_check_branch
        %154 = sbr.rel (%p152) target = $region20
      $region19: #{tpu_custom_call.1} parent=5 // pred_region
        // Predicated region
        $region21: #{tpu_custom_call.1} parent=19 // pred_check
          %p155 = pneg %p50
        $region22: #{tpu_custom_call.1} parent=19 // pred_check_branch
          %157 = sbr.rel (%p155) target = $region24
        $region23: #{tpu_custom_call.1} parent=19 // pred_region
          %p158 = scmp.lt.s32.totalorder %s20, 0
          %s159 = scalar_select %p158, %s20, 0
          %p160 = scmp.lt.s32.totalorder %s19, 1
          %s161 = scalar_select %p160, %s19, 1
          %p162 = scmp.lt.s32.totalorder %s159, 0
          %s163 = scalar_select %p162, %s159, 0
          %s164 = smul.addr %s161, 4
          %s165 = sadd.s32 %s163, %s164
          %s166 = smul.addr %s165, 8
          %s167 = scalar_lea.vmem %s0, %s166
          %p168 = scmp.lt.s32.totalorder %s20, 0
          %s169 = scalar_select %p168, %s20, 0
        $region24: #{tpu_custom_call.1} parent=19 // pred_fallthru
          _
        // Predicated region
        $region25: #{tpu_custom_call.1} parent=19 // pred_check
          %p170 = pneg %p78
        $region26: #{tpu_custom_call.1} parent=19 // pred_check_branch
          %172 = sbr.rel (%p170) target = $region28
        $region27: #{tpu_custom_call.1} parent=19 // pred_region
          %p173 = scmp.lt.s32.totalorder %s19, 1
          %s174 = scalar_select %p173, %s19, 1
          %p175 = scmp.lt.s32.totalorder %s20, 0
          %s176 = scalar_select %p175, %s20, 0
          %s177 = sadd.s32 %s176, %s174
          %s178 = smul.addr %s177, 8
          %s179 = scalar_lea.vmem %s1, %s178
        $region28: #{tpu_custom_call.1} parent=19 // pred_fallthru
          _
      $region20: #{tpu_custom_call.1} parent=5 // pred_fallthru
        _
      %p180 = scmp.le.s32.totalorder 1, %s12
      %p181 = scmp.lt.s32.totalorder %s12, 3
      %p182 = pnand %p180, %p181
      %p183 = pneg %p182
      // Predicated region
      $region29: #{tpu_custom_call.1} parent=5 // pred_check
        _
      $region30: #{tpu_custom_call.1} parent=5 // pred_check_branch
        %185 = sbr.rel (%p182) target = $region32
      $region31: #{tpu_custom_call.1} parent=5 // pred_region
        %s186 = ssub.s32 %s12, 1
        %p187 = scmp.lt.s32.totalorder %s22, 0
        %s188 = scalar_select %p187, %s22, 0
        %p189 = scmp.lt.s32.totalorder %s21, 1
        %s190 = scalar_select %p189, %s21, 1
        %p191 = scmp.lt.s32.totalorder %s188, 0
        %s192 = scalar_select %p191, %s188, 0
        %s193 = smul.addr %s190, 4
        %s194 = sadd.s32 %s192, %s193
        %s195 = smul.addr %s194, 8
        %s196 = scalar_lea.vmem %s0, %s195
        %p197 = pneg %p56
        %p198 = pneg %p53
        %p199 = scmp.lt.s32.totalorder %s21, 1
        %s200 = scalar_select %p199, %s21, 1
        %p201 = scmp.lt.s32.totalorder %s22, 0
        %s202 = scalar_select %p201, %s22, 0
        %s203 = sadd.s32 %s202, %s200
        %s204 = smul.addr %s203, 8
        %s205 = scalar_lea.vmem %s1, %s204
        %p206 = pneg %p84
        %p207 = pneg %p81
        %p208 = pneg %p105
        %p209 = pneg %p102
        %p210 = pneg %p133
        %p211 = pneg %p130
        %s212 = sand.u32 %s120, 1
        %s213 = scalar_lea.sflag [#allocation3], %s212
        %s214 = sand.u32 %s120, 1
        %s215 = smul.addr %s214, 8
        %s216 = scalar_lea.vmem [#allocation2], %s215
        %p217 = scmp.lt.s32.totalorder %s22, 0
        %s218 = scalar_select %p217, %s22, 0
        %p219 = scmp.lt.s32.totalorder %s21, 1
        %s220 = scalar_select %p219, %s21, 1
        %p221 = scmp.lt.s32.totalorder %s218, 0
        %s222 = scalar_select %p221, %s218, 0
        %s223 = smul.addr %s220, 4
        %s224 = sadd.s32 %s222, %s223
        %s225 = smul.addr %s224, 8
        %s226 = scalar_lea.vmem %s0, %s225
        %p227 = scmp.lt.s32.totalorder %s22, 0
        %s228 = scalar_select %p227, %s22, 0
        %p229 = scmp.lt.s32.totalorder %s21, 1
        %s230 = scalar_select %p229, %s21, 1
        %p231 = scmp.lt.s32.totalorder %s22, 0
        %s232 = scalar_select %p231, %s22, 0
        %s233 = sadd.s32 %s232, %s230
        %s234 = smul.addr %s233, 8
        %s235 = scalar_lea.vmem %s1, %s234
        %v236 = vld [vmem:[%s226] sm:$0xff]
        %v237 = vld [vmem:[%s226 + $0x8] sm:$0xff]
        %v238 = vld [vmem:[%s226 + $0x10] sm:$0xff]
        %v239 = vld [vmem:[%s226 + $0x18] sm:$0xff]
        %v240 = vld [vmem:[%s2] sm:$0xff]
        %v241 = vld [vmem:[%s2 + $0x8] sm:$0xff]
        %vm242 = vcmask 261120
        %v244 = vsel %vm242, %v240, 0
        %v247 = vsel %vm242, %v241, 0
        %249 = vmatpush.msra.mxu0 0.0
        %250 = vmatpush.msra.mxu0 0.0
        %251 = vmatpush.msra.mxu0 0.0
        %252 = vmatpush.msra.mxu0 0.0
        %253 = vmatpush.msra.mxu0 0.0
        %254 = vmatpush.msra.mxu0 0.0
        %255 = vmatpush.msra.mxu0 0.0
        %256 = vmatpush.msra.mxu0 0.0
        %257 = vmatpush.msra.mxu0 0.0
        %258 = vmatpush.msra.mxu0 0.0
        %259 = vmatpush.msra.mxu0 0.0
        %260 = vmatpush.msra.mxu0 0.0
        %261 = vmatpush.msra.mxu0 %v239
        %262 = vmatpush.msra.mxu0 %v238
        %263 = vmatpush.msra.mxu0 %v237
        %264 = vmatpush.msra.mxu0 %v236
        %265 = vmatmul.f32.gmra.mxu0 %v244
        %v266 = vpop.f32.mrf.mxu0
        %v267 = vadd.f32 0.0, %v266
        %268 = vmatmul.f32.gmra.mxu0 %v247
        %v269 = vpop.f32.mrf.mxu0
        %v270 = vadd.f32 0.0, %v269
        %271 = vdwg.mxu0
        %v272 = vlaneseq
        %v273 = vand.u32 %v272, 127
        %s274 = smul.u32 %s22, 9
        %v275 = vstv %s274
        %v276 = vadd.s32 %v273, %v275
        %vm277 = vcmp.lt.s32.totalorder %v276, 8
        %v278 = vsel %vm277, 1, 0
        %vm279 = vcmp.eq.s32.totalorder %v278, 1
        %v280 = vsel %vm279, %v267, 0.0
        %v281 = vsel %vm279, %v270, 0.0
        %283 = vrot.lane.b32.xlu0 %v281, 1
        %v284 = vpop.permute.xlu0 %283
        %vm286 = vcmask 7168
        %v287 = vsel %vm286, 0.0, %v284
        %v288 = vadd.f32 %v280, %v287
        %v289 = vld [vmem:[%s235] sm:$0xff]
        %vm290 = vcmp.eq.s32.totalorder %v273, 0
        %v291 = vsel %vm290, 1, 0
        %vm292 = vcmp.eq.s32.totalorder %v291, 1
        %294 = vset.pattern.permute.xlu0 0
        %295 = vperm.xlu0 %294, %v289
        %v296 = vpop.permute.xlu0 %295
        %v298 = vsel %vm292, %v296, 0.0
        %v299 = vadd.f32 %v288, %v298
        %vm300 = vcmask 72704
        %301 = vst.msk [vmem:[%s216] sm:$0xff] %vm300, %v299
        %s302 = sand.u32 %s120, 1
        %s303 = scalar_lea.sflag [#allocation3], %s302
        %s304 = sand.u32 %s120, 1
        %s305 = smul.addr %s304, 8
        %s306 = scalar_lea.vmem [#allocation2], %s305
        // Predicated region
        $region33: #{tpu_custom_call.1} parent=31 // pred_check
          %p307 = pneg %p130
        $region34: #{tpu_custom_call.1} parent=31 // pred_check_branch
          %309 = sbr.rel (%p307) target = $region36
        $region35: #{tpu_custom_call.1} parent=31 // pred_region
          %311 = vsyncadd %s303, 0
          %s312 = sadd.s32 %s22, %s21
          %s313 = smul.addr %s312, 8
          %s314 = scalar_lea.hbm %s3, %s313
          %s316 = sshll.u32 %s306, 4
          %s317 = int_to_ptr.vmem [resolvable:$true] %s316
          %s318 = sshll.u32 %s314, 4
          %s319 = int_to_ptr.hbm [resolvable:$true] %s318
          %321 = dma.vmem_to_hbm [thread:$0]  %s317, 128, %s319, %s303
        $region36: #{tpu_custom_call.1} parent=31 // pred_fallthru
          _
      $region32: #{tpu_custom_call.1} parent=5 // pred_fallthru
        _
      %p322 = scmp.le.s32.totalorder 2, %s12
      // Predicated region
      $region37: #{tpu_custom_call.1} parent=5 // pred_check
        %p323 = pneg %p322
      $region38: #{tpu_custom_call.1} parent=5 // pred_check_branch
        %325 = sbr.rel (%p323) target = $region40
      $region39: #{tpu_custom_call.1} parent=5 // pred_region
        %s326 = ssub.s32 %s12, 2
        // Predicated region
        $region41: #{tpu_custom_call.1} parent=39 // pred_check
          %p327 = pneg %p136
        $region42: #{tpu_custom_call.1} parent=39 // pred_check_branch
          %329 = sbr.rel (%p327) target = $region44
        $region43: #{tpu_custom_call.1} parent=39 // pred_region
          %s330 = sand.u32 %s121, 1
          %s331 = scalar_lea.sflag [#allocation3], %s330
          %s332 = sand.u32 %s121, 1
          %s333 = smul.addr %s332, 8
          %s334 = scalar_lea.vmem [#allocation2], %s333
          %336 = dma.done %s331, 128
        $region44: #{tpu_custom_call.1} parent=39 // pred_fallthru
          _
      $region40: #{tpu_custom_call.1} parent=5 // pred_fallthru
        _
    $region6: #{tpu_custom_call.1} parent=1 // loop_footer
      %s16 = sadd.s32 1, %s12
    $region7: #{tpu_custom_call.1} parent=1 // loop_footer_branch
      %11 = sbr.rel target = $region3
    $region8: #{tpu_custom_call.1} parent=1 // loop_exit
      _
    %337 = vsyncpa [#allocation3], 1
    %s338 = scalar_lea.sflag [#allocation3], 1
    %339 = vsyncpa %s338, 1

</llo_original>
